<compile_context>
chip_gen: v7x
topology: tpu7x:2x2x1
jax: 0.10.0
libtpu: 0.0.40
codegen_flags: <defaults>
</compile_context>

<pallas_src>
import jax
import jax.numpy as jnp
from jax.experimental import pallas as pl
from jax.experimental.pallas import tpu as pltpu


def _round_up(x, m):
    return ((x + m - 1) // m) * m


def classifier_kernel(x_ref, w1_ref, b1_ref, w2_ref, b2_ref, w3_ref, b3_ref,
                      q_ref, logq_ref):
    # In-kernel cast of the input tile (VPU; free relative to the DMA it saves).
    x = x_ref[...].astype(jnp.bfloat16)

    # fc1 + relu  (bf16 MXU operands, f32 accumulation / elementwise)
    h1 = jnp.dot(x, w1_ref[...], preferred_element_type=jnp.float32) + b1_ref[...]
    h1 = jnp.maximum(h1, 0.0).astype(jnp.bfloat16)

    # fc2 + relu
    h2 = jnp.dot(h1, w2_ref[...], preferred_element_type=jnp.float32) + b2_ref[...]
    h2 = jnp.maximum(h2, 0.0).astype(jnp.bfloat16)

    # fc3: logits over the lane-padded feature axis (padded columns carry a
    # -1e30 bias so exp(.) underflows to exactly 0 below).
    h3 = jnp.dot(h2, w3_ref[...], preferred_element_type=jnp.float32) + b3_ref[...]

    # Numerically stable softmax / log_softmax along the last axis.
    m = jnp.max(h3, axis=-1, keepdims=True)
    z = h3 - m
    e = jnp.exp(z)
    s = jnp.sum(e, axis=-1, keepdims=True)
    q_ref[...] = e * pl.reciprocal(s, approx=True)   # EUP slot, ~free
    logq_ref[...] = z - jnp.log(s)


def classifier_forward(x, params, *, block_b=None):
    """Equivalent of Classifier.forward: returns (softmax, log_softmax).

    x: any shape (B, ...) -- flattened to (B, D) like `x.view(B, -1).float()`.
    params: (w1, b1, w2, b2, w3, b3), weights (in, out), biases (1, out), f32.
    """
    B = x.shape[0]
    x2d = x.reshape(B, -1)                 # keep source dtype; cast in-kernel
    D = x2d.shape[1]

    w1, b1, w2, b2, w3, b3 = params
    H1 = w1.shape[1]
    H2 = w2.shape[1]
    F = w3.shape[1]

    # Layout prep (ideally done once per model, cheap under jit):
    #  - weights to bf16 for the MXU, biases stay f32
    #  - pad the feature dim up to 128 lanes for unmasked output stores;
    #    padded logit columns get bias -1e30 so softmax ignores them.
    Fp = _round_up(F, 128)
    w1b = w1.astype(jnp.bfloat16)
    w2b = w2.astype(jnp.bfloat16)
    w3b = w3.astype(jnp.bfloat16)
    if Fp != F:
        w3b = jnp.pad(w3b, ((0, 0), (0, Fp - F)))
        b3 = jnp.pad(b3, ((0, 0), (0, Fp - F)), constant_values=-1e30)

    # Row tile: big enough that the pipeline overlaps DMA with compute.
    if block_b is None:
        block_b = min(512, _round_up(B, 8))
    tm = max(8, _round_up(min(block_b, _round_up(B, 8)), 8))

    # Pad ragged batches up to a multiple of the row tile (sliced off below).
    Bp = _round_up(B, tm)
    if Bp != B:
        x2d = jnp.pad(x2d, ((0, Bp - B), (0, 0)))
    grid = (Bp // tm,)

    out_shape = (
        jax.ShapeDtypeStruct((Bp, Fp), jnp.float32),
        jax.ShapeDtypeStruct((Bp, Fp), jnp.float32),
    )

    in_specs = [
        pl.BlockSpec((tm, D), lambda i: (i, 0)),     # x tile (pipelined)
        pl.BlockSpec((D, H1), lambda i: (0, 0)),     # resident weights/biases
        pl.BlockSpec((1, H1), lambda i: (0, 0)),
        pl.BlockSpec((H1, H2), lambda i: (0, 0)),
        pl.BlockSpec((1, H2), lambda i: (0, 0)),
        pl.BlockSpec((H2, Fp), lambda i: (0, 0)),
        pl.BlockSpec((1, Fp), lambda i: (0, 0)),
    ]
    out_specs = (
        pl.BlockSpec((tm, Fp), lambda i: (i, 0)),
        pl.BlockSpec((tm, Fp), lambda i: (i, 0)),
    )

    # VMEM budget: double-buffered x tile + 2 double-buffered outputs + weights,
    # with 2x headroom, clamped into a generation-safe [16 MiB, 64 MiB] range.
    itemsize = jnp.dtype(x2d.dtype).itemsize
    weight_bytes = (D * H1 + H1 * H2 + H2 * Fp) * 2 + (H1 + H2 + Fp) * 4
    step_bytes = 2 * tm * D * itemsize + 2 * 2 * tm * Fp * 4 + 2 * weight_bytes
    vmem_limit = int(min(max(2 * step_bytes, 16 * 1024 * 1024), 64 * 1024 * 1024))

    cost = pl.CostEstimate(
        flops=int(2 * Bp * (D * H1 + H1 * H2 + H2 * Fp)),
        transcendentals=int(Bp * (Fp + 2)),            # exp + log + reciprocal
        bytes_accessed=int(Bp * D * itemsize + 2 * Bp * Fp * 4 + weight_bytes),
    )

    q_pad, logq_pad = pl.pallas_call(
        classifier_kernel,
        out_shape=out_shape,
        grid=grid,
        in_specs=in_specs,
        out_specs=out_specs,
        compiler_params=pltpu.CompilerParams(
            dimension_semantics=("parallel",),
            vmem_limit_bytes=vmem_limit,
        ),
        cost_estimate=cost,
    )(x2d, w1b, b1, w2b, b2, w3b, b3)

    # Slice away batch / feature padding.
    return q_pad[:B, :F], logq_pad[:B, :F]


def init_params(key, input_dim, nb_features, dim_h1, dim_h2):
    """Deterministic synthetic init (PyTorch nn.Linear-like uniform bounds).
    Weights are stored pre-transposed as (in, out); biases as (1, out); f32."""
    ks = jax.random.split(key, 6)

    def linear(kw, kb, fan_in, fan_out):
        bound = 1.0 / jnp.sqrt(fan_in)
        w = jax.random.uniform(kw, (fan_in, fan_out), jnp.float32, -bound, bound)
        b = jax.random.uniform(kb, (1, fan_out), jnp.float32, -bound, bound)
        return w, b

    w1, b1 = linear(ks[0], ks[1], input_dim, dim_h1)
    w2, b2 = linear(ks[2], ks[3], dim_h1, dim_h2)
    w3, b3 = linear(ks[4], ks[5], dim_h2, nb_features)
    return (w1, b1, w2, b2, w3, b3)


def reference_forward(x, params):
    """Pure-JAX f32 reference matching the PyTorch module semantics."""
    B = x.shape[0]
    x2d = x.reshape(B, -1).astype(jnp.float32)
    w1, b1, w2, b2, w3, b3 = params
    h1 = jax.nn.relu(x2d @ w1 + b1)
    h2 = jax.nn.relu(h1 @ w2 + b2)
    h3 = h2 @ w3 + b3
    return jax.nn.softmax(h3, -1), jax.nn.log_softmax(h3, -1)


if __name__ == "__main__":
    key = jax.random.PRNGKey(0)
    k_x, k_p = jax.random.split(key)

    # Small shapes consistent with the module: flattened input = 4*4*4 = 64.
    B, C, H, W = 64, 4, 4, 4
    input_dim = C * H * W          # 64
    dim_h1, dim_h2 = 32, 32
    nb_features = 16

    x = jax.random.normal(k_x, (B, C, H, W), dtype=jnp.float32)
    params = init_params(k_p, input_dim, nb_features, dim_h1, dim_h2)

    # block_b=16 -> a 4-step "parallel" grid so the pipeline actually runs,
    # even at this small demo batch.
    q_x, logq_x = classifier_forward(x, params, block_b=16)
    q_x, logq_x = jax.block_until_ready((q_x, logq_x))

    q_ref, logq_ref = reference_forward(x, params)
    assert q_x.shape == q_ref.shape and logq_x.shape == logq_ref.shape
    # bf16 MXU operands + approx reciprocal vs. f32 reference -> looser tol.
    assert jnp.allclose(q_x, q_ref, atol=2e-2, rtol=2e-2)
    assert jnp.allclose(logq_x, logq_ref, atol=2e-2, rtol=2e-2)

    print("KERNEL_OK")
</pallas_src>

<mosaic_0001>
module attributes {stable_mosaic.version = 11 : i64} {
  func.func @classifier_kernel(%arg0: i32, %arg1: memref<16x64xf32, #tpu.memory_space<vmem>>, %arg2: memref<64x32xbf16, #tpu.memory_space<vmem>>, %arg3: memref<1x32xf32, #tpu.memory_space<vmem>>, %arg4: memref<32x32xbf16, #tpu.memory_space<vmem>>, %arg5: memref<1x32xf32, #tpu.memory_space<vmem>>, %arg6: memref<32x128xbf16, #tpu.memory_space<vmem>>, %arg7: memref<1x128xf32, #tpu.memory_space<vmem>>, %arg8: memref<16x128xf32, #tpu.memory_space<vmem>>, %arg9: memref<16x128xf32, #tpu.memory_space<vmem>>) attributes {dimension_semantics = [#tpu.dimension_semantics<parallel>], iteration_bounds = array<i64: 4>, scalar_prefetch = 0 : i64, scratch_operands = 0 : i64, tpu.core_type = #tpu.core_type<tc>, window_params = [{transform_indices = @transform_0, window_bounds = array<i64: 16, 64>}, {pipeline_mode = #tpu.pipeline_mode<synchronous>, transform_indices = @transform_1, window_bounds = array<i64: 64, 32>}, {pipeline_mode = #tpu.pipeline_mode<synchronous>, transform_indices = @transform_2, window_bounds = array<i64: 1, 32>}, {pipeline_mode = #tpu.pipeline_mode<synchronous>, transform_indices = @transform_3, window_bounds = array<i64: 32, 32>}, {pipeline_mode = #tpu.pipeline_mode<synchronous>, transform_indices = @transform_4, window_bounds = array<i64: 1, 32>}, {pipeline_mode = #tpu.pipeline_mode<synchronous>, transform_indices = @transform_5, window_bounds = array<i64: 32, 128>}, {pipeline_mode = #tpu.pipeline_mode<synchronous>, transform_indices = @transform_6, window_bounds = array<i64: 1, 128>}, {transform_indices = @transform_7, window_bounds = array<i64: 16, 128>}, {transform_indices = @transform_8, window_bounds = array<i64: 16, 128>}]} {
    %c0 = arith.constant 0 : index
    %c0_0 = arith.constant 0 : index
    %0 = vector.load %arg1[%c0, %c0_0] : memref<16x64xf32, #tpu.memory_space<vmem>>, vector<16x64xf32>
    %1 = arith.truncf %0 : vector<16x64xf32> to vector<16x64xbf16>
    %c0_1 = arith.constant 0 : index
    %c0_2 = arith.constant 0 : index
    %2 = vector.load %arg2[%c0_1, %c0_2] : memref<64x32xbf16, #tpu.memory_space<vmem>>, vector<64x32xbf16>
    %cst = arith.constant dense<0.000000e+00> : vector<16x32xf32>
    %3 = tpu.matmul %1, %2, %cst {dimension_numbers = #tpu.dot_dimension_numbers<[1], [0], [0], [1], [0, 0, 1, 1], [], []>} : vector<16x64xbf16>, vector<64x32xbf16>, vector<16x32xf32> -> vector<16x32xf32>
    %c0_3 = arith.constant 0 : index
    %c0_4 = arith.constant 0 : index
    %4 = vector.load %arg3[%c0_3, %c0_4] : memref<1x32xf32, #tpu.memory_space<vmem>>, vector<1x32xf32>
    %5 = vector.broadcast %4 : vector<1x32xf32> to vector<16x32xf32>
    %6 = arith.addf %3, %5 : vector<16x32xf32>
    %cst_5 = arith.constant 0.000000e+00 : f32
    %7 = vector.broadcast %cst_5 : f32 to vector<16x32xf32>
    %8 = arith.maximumf %6, %7 : vector<16x32xf32>
    %9 = arith.truncf %8 : vector<16x32xf32> to vector<16x32xbf16>
    %c0_6 = arith.constant 0 : index
    %c0_7 = arith.constant 0 : index
    %10 = vector.load %arg4[%c0_6, %c0_7] : memref<32x32xbf16, #tpu.memory_space<vmem>>, vector<32x32xbf16>
    %cst_8 = arith.constant dense<0.000000e+00> : vector<16x32xf32>
    %11 = tpu.matmul %9, %10, %cst_8 {dimension_numbers = #tpu.dot_dimension_numbers<[1], [0], [0], [1], [0, 0, 1, 1], [], []>} : vector<16x32xbf16>, vector<32x32xbf16>, vector<16x32xf32> -> vector<16x32xf32>
    %c0_9 = arith.constant 0 : index
    %c0_10 = arith.constant 0 : index
    %12 = vector.load %arg5[%c0_9, %c0_10] : memref<1x32xf32, #tpu.memory_space<vmem>>, vector<1x32xf32>
    %13 = vector.broadcast %12 : vector<1x32xf32> to vector<16x32xf32>
    %14 = arith.addf %11, %13 : vector<16x32xf32>
    %cst_11 = arith.constant 0.000000e+00 : f32
    %15 = vector.broadcast %cst_11 : f32 to vector<16x32xf32>
    %16 = arith.maximumf %14, %15 : vector<16x32xf32>
    %17 = arith.truncf %16 : vector<16x32xf32> to vector<16x32xbf16>
    %c0_12 = arith.constant 0 : index
    %c0_13 = arith.constant 0 : index
    %18 = vector.load %arg6[%c0_12, %c0_13] : memref<32x128xbf16, #tpu.memory_space<vmem>>, vector<32x128xbf16>
    %cst_14 = arith.constant dense<0.000000e+00> : vector<16x128xf32>
    %19 = tpu.matmul %17, %18, %cst_14 {dimension_numbers = #tpu.dot_dimension_numbers<[1], [0], [0], [1], [0, 0, 1, 1], [], []>} : vector<16x32xbf16>, vector<32x128xbf16>, vector<16x128xf32> -> vector<16x128xf32>
    %c0_15 = arith.constant 0 : index
    %c0_16 = arith.constant 0 : index
    %20 = vector.load %arg7[%c0_15, %c0_16] : memref<1x128xf32, #tpu.memory_space<vmem>>, vector<1x128xf32>
    %21 = vector.broadcast %20 : vector<1x128xf32> to vector<16x128xf32>
    %22 = arith.addf %19, %21 : vector<16x128xf32>
    %cst_17 = arith.constant dense<0xFF800000> : vector<16xf32>
    %23 = vector.multi_reduction <maximumf>, %22, %cst_17 [1] : vector<16x128xf32> to vector<16xf32>
    %24 = vector.shape_cast %23 : vector<16xf32> to vector<16x1xf32>
    %25 = vector.broadcast %24 : vector<16x1xf32> to vector<16x128xf32>
    %26 = arith.subf %22, %25 : vector<16x128xf32>
    %27 = math.exp %26 : vector<16x128xf32>
    %cst_18 = arith.constant dense<0.000000e+00> : vector<16xf32>
    %28 = vector.multi_reduction <add>, %27, %cst_18 [1] : vector<16x128xf32> to vector<16xf32>
    %29 = vector.shape_cast %28 : vector<16xf32> to vector<16x1xf32>
    %30 = tpu.reciprocal %29 {approx = true} : vector<16x1xf32> -> vector<16x1xf32>
    %31 = vector.broadcast %30 : vector<16x1xf32> to vector<16x128xf32>
    %32 = arith.mulf %27, %31 : vector<16x128xf32>
    %c0_19 = arith.constant 0 : index
    %c0_20 = arith.constant 0 : index
    %33 = vector.load %arg8[%c0_19, %c0_20] : memref<16x128xf32, #tpu.memory_space<vmem>>, vector<16x128xf32>
    tpu.vector_store %arg8[%c0_19, %c0_20], %32 {strides = array<i32>} : memref<16x128xf32, #tpu.memory_space<vmem>>, vector<16x128xf32>,
    %34 = math.log %29 : vector<16x1xf32>
    %35 = vector.broadcast %34 : vector<16x1xf32> to vector<16x128xf32>
    %36 = arith.subf %26, %35 : vector<16x128xf32>
    %c0_21 = arith.constant 0 : index
    %c0_22 = arith.constant 0 : index
    %37 = vector.load %arg9[%c0_21, %c0_22] : memref<16x128xf32, #tpu.memory_space<vmem>>, vector<16x128xf32>
    tpu.vector_store %arg9[%c0_21, %c0_22], %36 {strides = array<i32>} : memref<16x128xf32, #tpu.memory_space<vmem>>, vector<16x128xf32>,
    return
  }
  func.func @transform_0(%arg0: i32) -> (i32, i32) {
    %c0_i32 = arith.constant 0 : i32
    %c0_i32_0 = arith.constant 0 : i32
    return %arg0, %c0_i32 : i32, i32
  }
  func.func @transform_1(%arg0: i32) -> (i32, i32) {
    %c0_i32 = arith.constant 0 : i32
    %c0_i32_0 = arith.constant 0 : i32
    %c0_i32_1 = arith.constant 0 : i32
    return %c0_i32, %c0_i32_0 : i32, i32
  }
  func.func @transform_2(%arg0: i32) -> (i32, i32) {
    %c0_i32 = arith.constant 0 : i32
    %c0_i32_0 = arith.constant 0 : i32
    %c0_i32_1 = arith.constant 0 : i32
    return %c0_i32, %c0_i32_0 : i32, i32
  }
  func.func @transform_3(%arg0: i32) -> (i32, i32) {
    %c0_i32 = arith.constant 0 : i32
    %c0_i32_0 = arith.constant 0 : i32
    %c0_i32_1 = arith.constant 0 : i32
    return %c0_i32, %c0_i32_0 : i32, i32
  }
  func.func @transform_4(%arg0: i32) -> (i32, i32) {
    %c0_i32 = arith.constant 0 : i32
    %c0_i32_0 = arith.constant 0 : i32
    %c0_i32_1 = arith.constant 0 : i32
    return %c0_i32, %c0_i32_0 : i32, i32
  }
  func.func @transform_5(%arg0: i32) -> (i32, i32) {
    %c0_i32 = arith.constant 0 : i32
    %c0_i32_0 = arith.constant 0 : i32
    %c0_i32_1 = arith.constant 0 : i32
    return %c0_i32, %c0_i32_0 : i32, i32
  }
  func.func @transform_6(%arg0: i32) -> (i32, i32) {
    %c0_i32 = arith.constant 0 : i32
    %c0_i32_0 = arith.constant 0 : i32
    %c0_i32_1 = arith.constant 0 : i32
    return %c0_i32, %c0_i32_0 : i32, i32
  }
  func.func @transform_7(%arg0: i32) -> (i32, i32) {
    %c0_i32 = arith.constant 0 : i32
    %c0_i32_0 = arith.constant 0 : i32
    return %arg0, %c0_i32 : i32, i32
  }
  func.func @transform_8(%arg0: i32) -> (i32, i32) {
    %c0_i32 = arith.constant 0 : i32
    %c0_i32_0 = arith.constant 0 : i32
    return %arg0, %c0_i32 : i32, i32
  }
}

</mosaic_0001>

<llo_original>
// kernel: tpu_custom_call.1
$region0: #{tpu_custom_call.1}
  #allocation0 [shape = 'u32[]', space=smem, size = 0x4, offset = 0x4, fixed_abs, tag = 'smem constant byte address 0x4 - core index']
  #allocation1 [shape = 'u32[144,128]{1,0:T(1,128)}', space=vmem, size = 0x12000, scoped, tag = 'internal scratch']
  %s0 = inlined_call_operand.hbm [shape: f32[64,64], index: 0, kind: input, shape index: {}]
  %s1 = inlined_call_operand.vmem [shape: bf16[64,32], index: 1, kind: input, shape index: {}]
  %s2 = inlined_call_operand.vmem [shape: f32[1,32], index: 2, kind: input, shape index: {}]
  %s3 = inlined_call_operand.vmem [shape: bf16[32,32], index: 3, kind: input, shape index: {}]
  %s4 = inlined_call_operand.vmem [shape: f32[1,32], index: 4, kind: input, shape index: {}]
  %s5 = inlined_call_operand.vmem [shape: bf16[32,128], index: 5, kind: input, shape index: {}]
  %s6 = inlined_call_operand.vmem [shape: f32[1,128], index: 6, kind: input, shape index: {}]
  %s7 = inlined_call_operand.hbm [shape: f32[64,128], index: 7, kind: output, shape index: {0}]
  %s8 = inlined_call_operand.hbm [shape: f32[64,128], index: 8, kind: output, shape index: {1}]
  %9 = xla_tuple %s7, %s8
  %s10 = sld [smem:[#allocation0]]
  $region73: #{tpu_custom_call.1} parent=0
    _
  %s12 = ssub.s32 1, %s10
  %s13 = scalar_select 0, %s12, %s10
  $region1: #{tpu_custom_call.1} parent=0
    #allocation2 [shape = 'u8[16384]{0}', space=vmem, size = 0x4000, scoped, tag = 'input window, operand 0']
    #allocation3 [shape = 's32[2]{0}', space=sflag, size = 0x8, scoped, tag = 'scoped memory for tpu_custom_call.1']
    #allocation4 [shape = 's32[2]{0}', space=sflag, size = 0x8, scoped, tag = 'scoped memory for tpu_custom_call.1']
    #allocation5 [shape = 'u8[16384]{0}', space=vmem, size = 0x4000, scoped, tag = 'output window, operand 0']
    #allocation6 [shape = 'u8[16384]{0}', space=vmem, size = 0x4000, scoped, tag = 'output window, operand 1']
    #allocation7 [shape = 's32[2]{0}', space=sflag, size = 0x8, scoped, tag = 'scoped memory for tpu_custom_call.1']
    %14 = vsyncpa [#allocation3], 0
    %s15 = scalar_lea.sflag [#allocation3], 1
    %16 = vsyncpa %s15, 0
    %17 = vsyncpa [#allocation4], 0
    %s18 = scalar_lea.sflag [#allocation4], 1
    %19 = vsyncpa %s18, 0
    %20 = vsyncpa [#allocation7], 0
    %s21 = scalar_lea.sflag [#allocation7], 1
    %22 = vsyncpa %s21, 0
    loop: start=0, step=1, limit=6
    $region2: #{tpu_custom_call.1} parent=1 // loop_pre_header
      _
    $region3: #{tpu_custom_call.1} parent=1 // loop_header
      %s24 = sphi 0, %s28
      %p25 = scmp.ge.s32.totalorder %s24, 6
      %s34 = sphi 0, %s36
      %s37 = sphi 0, %s34
      %s38 = sphi 0, %s37
      %s54 = sphi 0, %s38
      %s58 = sphi 0, %s58
      %s60 = sphi 0, %s58
      %s61 = sphi 0, %s60
      %s75 = sphi 0, %s61
      %s79 = sphi 0, %s79
      %s81 = sphi 0, %s79
      %s82 = sphi 0, %s81
      %s96 = sphi 0, %s82
      %s100 = sphi 0, %s100
      %s102 = sphi 0, %s100
      %s103 = sphi 0, %s102
      %s117 = sphi 0, %s103
      %s121 = sphi 0, %s121
      %s123 = sphi 0, %s121
      %s124 = sphi 0, %s123
      %s138 = sphi 0, %s124
      %s142 = sphi 0, %s142
      %s144 = sphi 0, %s142
      %s145 = sphi 0, %s144
      %s159 = sphi 0, %s145
      %s163 = sphi 0, %s163
      %s165 = sphi 0, %s163
      %s166 = sphi 0, %s165
      %s180 = sphi 0, %s166
      %s186 = sphi 0, %s188
      %s189 = sphi 0, %s186
      %s190 = sphi 0, %s189
      %s206 = sphi 0, %s190
      %s212 = sphi 0, %s214
      %s215 = sphi 0, %s212
      %s216 = sphi 0, %s215
      %s232 = sphi 0, %s216
    $region4: #{tpu_custom_call.1} parent=1 // loop_header_branch
      %27 = sbr.rel (%p25) target = $region8
    $region5: #{tpu_custom_call.1} parent=1 // loop_body
      %s29 = ssub.s32 %s24, 1
      %s30 = ssub.s32 %s24, 2
      %s31 = sadd.s32 %s24, 1
      %s32 = ssub.s32 %s24, %s31
      %p33 = scmp.eq.s32.totalorder %s32, 0
      %s35 = sadd.s32 %s34, 1
      %s36 = scalar_select %p33, %s34, %s35
      %p39 = pneg %p33
      %p40 = scmp.eq.s32.totalorder %s24, 3
      %p41 = por %p39, %p40
      %p42 = scmp.ne.s32.totalorder %s34, %s37
      %p43 = scmp.eq.s32.totalorder %s24, 0
      %p44 = por %p42, %p43
      %p45 = scmp.ne.s32.totalorder %s34, %s37
      %p46 = scmp.eq.s32.totalorder %s29, 3
      %p47 = por %p45, %p46
      %p48 = scmp.ne.s32.totalorder %s37, %s38
      %p49 = scmp.eq.s32.totalorder %s29, 0
      %p50 = por %p48, %p49
      %p51 = scmp.ne.s32.totalorder %s37, %s38
      %p52 = scmp.eq.s32.totalorder %s30, 3
      %p53 = por %p51, %p52
      %p55 = scmp.ne.s32.totalorder %s38, %s54
      %p56 = scmp.eq.s32.totalorder %s30, 0
      %p57 = por %p55, %p56
      %s59 = sadd.s32 %s58, 1
      %p62 = scmp.eq.s32.totalorder %s24, 3
      %p63 = scmp.ne.s32.totalorder %s58, %s60
      %p64 = scmp.eq.s32.totalorder %s24, 0
      %p65 = por %p63, %p64
      %p66 = scmp.ne.s32.totalorder %s58, %s60
      %p67 = scmp.eq.s32.totalorder %s29, 3
      %p68 = por %p66, %p67
      %p69 = scmp.ne.s32.totalorder %s60, %s61
      %p70 = scmp.eq.s32.totalorder %s29, 0
      %p71 = por %p69, %p70
      %p72 = scmp.ne.s32.totalorder %s60, %s61
      %p73 = scmp.eq.s32.totalorder %s30, 3
      %p74 = por %p72, %p73
      %p76 = scmp.ne.s32.totalorder %s61, %s75
      %p77 = scmp.eq.s32.totalorder %s30, 0
      %p78 = por %p76, %p77
      %s80 = sadd.s32 %s79, 1
      %p83 = scmp.eq.s32.totalorder %s24, 3
      %p84 = scmp.ne.s32.totalorder %s79, %s81
      %p85 = scmp.eq.s32.totalorder %s24, 0
      %p86 = por %p84, %p85
      %p87 = scmp.ne.s32.totalorder %s79, %s81
      %p88 = scmp.eq.s32.totalorder %s29, 3
      %p89 = por %p87, %p88
      %p90 = scmp.ne.s32.totalorder %s81, %s82
      %p91 = scmp.eq.s32.totalorder %s29, 0
      %p92 = por %p90, %p91
      %p93 = scmp.ne.s32.totalorder %s81, %s82
      %p94 = scmp.eq.s32.totalorder %s30, 3
      %p95 = por %p93, %p94
      %p97 = scmp.ne.s32.totalorder %s82, %s96
      %p98 = scmp.eq.s32.totalorder %s30, 0
      %p99 = por %p97, %p98
      %s101 = sadd.s32 %s100, 1
      %p104 = scmp.eq.s32.totalorder %s24, 3
      %p105 = scmp.ne.s32.totalorder %s100, %s102
      %p106 = scmp.eq.s32.totalorder %s24, 0
      %p107 = por %p105, %p106
      %p108 = scmp.ne.s32.totalorder %s100, %s102
      %p109 = scmp.eq.s32.totalorder %s29, 3
      %p110 = por %p108, %p109
      %p111 = scmp.ne.s32.totalorder %s102, %s103
      %p112 = scmp.eq.s32.totalorder %s29, 0
      %p113 = por %p111, %p112
      %p114 = scmp.ne.s32.totalorder %s102, %s103
      %p115 = scmp.eq.s32.totalorder %s30, 3
      %p116 = por %p114, %p115
      %p118 = scmp.ne.s32.totalorder %s103, %s117
      %p119 = scmp.eq.s32.totalorder %s30, 0
      %p120 = por %p118, %p119
      %s122 = sadd.s32 %s121, 1
      %p125 = scmp.eq.s32.totalorder %s24, 3
      %p126 = scmp.ne.s32.totalorder %s121, %s123
      %p127 = scmp.eq.s32.totalorder %s24, 0
      %p128 = por %p126, %p127
      %p129 = scmp.ne.s32.totalorder %s121, %s123
      %p130 = scmp.eq.s32.totalorder %s29, 3
      %p131 = por %p129, %p130
      %p132 = scmp.ne.s32.totalorder %s123, %s124
      %p133 = scmp.eq.s32.totalorder %s29, 0
      %p134 = por %p132, %p133
      %p135 = scmp.ne.s32.totalorder %s123, %s124
      %p136 = scmp.eq.s32.totalorder %s30, 3
      %p137 = por %p135, %p136
      %p139 = scmp.ne.s32.totalorder %s124, %s138
      %p140 = scmp.eq.s32.totalorder %s30, 0
      %p141 = por %p139, %p140
      %s143 = sadd.s32 %s142, 1
      %p146 = scmp.eq.s32.totalorder %s24, 3
      %p147 = scmp.ne.s32.totalorder %s142, %s144
      %p148 = scmp.eq.s32.totalorder %s24, 0
      %p149 = por %p147, %p148
      %p150 = scmp.ne.s32.totalorder %s142, %s144
      %p151 = scmp.eq.s32.totalorder %s29, 3
      %p152 = por %p150, %p151
      %p153 = scmp.ne.s32.totalorder %s144, %s145
      %p154 = scmp.eq.s32.totalorder %s29, 0
      %p155 = por %p153, %p154
      %p156 = scmp.ne.s32.totalorder %s144, %s145
      %p157 = scmp.eq.s32.totalorder %s30, 3
      %p158 = por %p156, %p157
      %p160 = scmp.ne.s32.totalorder %s145, %s159
      %p161 = scmp.eq.s32.totalorder %s30, 0
      %p162 = por %p160, %p161
      %s164 = sadd.s32 %s163, 1
      %p167 = scmp.eq.s32.totalorder %s24, 3
      %p168 = scmp.ne.s32.totalorder %s163, %s165
      %p169 = scmp.eq.s32.totalorder %s24, 0
      %p170 = por %p168, %p169
      %p171 = scmp.ne.s32.totalorder %s163, %s165
      %p172 = scmp.eq.s32.totalorder %s29, 3
      %p173 = por %p171, %p172
      %p174 = scmp.ne.s32.totalorder %s165, %s166
      %p175 = scmp.eq.s32.totalorder %s29, 0
      %p176 = por %p174, %p175
      %p177 = scmp.ne.s32.totalorder %s165, %s166
      %p178 = scmp.eq.s32.totalorder %s30, 3
      %p179 = por %p177, %p178
      %p181 = scmp.ne.s32.totalorder %s166, %s180
      %p182 = scmp.eq.s32.totalorder %s30, 0
      %p183 = por %p181, %p182
      %s184 = ssub.s32 %s24, %s31
      %p185 = scmp.eq.s32.totalorder %s184, 0
      %s187 = sadd.s32 %s186, 1
      %s188 = scalar_select %p185, %s186, %s187
      %p191 = pneg %p185
      %p192 = scmp.eq.s32.totalorder %s24, 3
      %p193 = por %p191, %p192
      %p194 = scmp.ne.s32.totalorder %s186, %s189
      %p195 = scmp.eq.s32.totalorder %s24, 0
      %p196 = por %p194, %p195
      %p197 = scmp.ne.s32.totalorder %s186, %s189
      %p198 = scmp.eq.s32.totalorder %s29, 3
      %p199 = por %p197, %p198
      %p200 = scmp.ne.s32.totalorder %s189, %s190
      %p201 = scmp.eq.s32.totalorder %s29, 0
      %p202 = por %p200, %p201
      %p203 = scmp.ne.s32.totalorder %s189, %s190
      %p204 = scmp.eq.s32.totalorder %s30, 3
      %p205 = por %p203, %p204
      %p207 = scmp.ne.s32.totalorder %s190, %s206
      %p208 = scmp.eq.s32.totalorder %s30, 0
      %p209 = por %p207, %p208
      %s210 = ssub.s32 %s24, %s31
      %p211 = scmp.eq.s32.totalorder %s210, 0
      %s213 = sadd.s32 %s212, 1
      %s214 = scalar_select %p211, %s212, %s213
      %p217 = pneg %p211
      %p218 = scmp.eq.s32.totalorder %s24, 3
      %p219 = por %p217, %p218
      %p220 = scmp.ne.s32.totalorder %s212, %s215
      %p221 = scmp.eq.s32.totalorder %s24, 0
      %p222 = por %p220, %p221
      %p223 = scmp.ne.s32.totalorder %s212, %s215
      %p224 = scmp.eq.s32.totalorder %s29, 3
      %p225 = por %p223, %p224
      %p226 = scmp.ne.s32.totalorder %s215, %s216
      %p227 = scmp.eq.s32.totalorder %s29, 0
      %p228 = por %p226, %p227
      %p229 = scmp.ne.s32.totalorder %s215, %s216
      %p230 = scmp.eq.s32.totalorder %s30, 3
      %p231 = por %p229, %p230
      %p233 = scmp.ne.s32.totalorder %s216, %s232
      %p234 = scmp.eq.s32.totalorder %s30, 0
      %p235 = por %p233, %p234
      %p236 = scmp.le.s32.totalorder 1, %s24
      %p237 = scmp.lt.s32.totalorder %s24, 5
      %p238 = pnand %p236, %p237
      %p239 = pneg %p238
      // Predicated region
      $region9: #{tpu_custom_call.1} parent=5 // pred_check
        _
      $region10: #{tpu_custom_call.1} parent=5 // pred_check_branch
        %241 = sbr.rel (%p238) target = $region12
      $region11: #{tpu_custom_call.1} parent=5 // pred_region
        %s242 = ssub.s32 %s24, 1
        // Predicated region
        $region13: #{tpu_custom_call.1} parent=11 // pred_check
          %p243 = pneg %p71
        $region14: #{tpu_custom_call.1} parent=11 // pred_check_branch
          %245 = sbr.rel (%p243) target = $region16
        $region15: #{tpu_custom_call.1} parent=11 // pred_region
          _
        $region16: #{tpu_custom_call.1} parent=11 // pred_fallthru
          _
        // Predicated region
        $region17: #{tpu_custom_call.1} parent=11 // pred_check
          %p246 = pneg %p92
        $region18: #{tpu_custom_call.1} parent=11 // pred_check_branch
          %248 = sbr.rel (%p246) target = $region20
        $region19: #{tpu_custom_call.1} parent=11 // pred_region
          _
        $region20: #{tpu_custom_call.1} parent=11 // pred_fallthru
          _
        // Predicated region
        $region21: #{tpu_custom_call.1} parent=11 // pred_check
          %p249 = pneg %p113
        $region22: #{tpu_custom_call.1} parent=11 // pred_check_branch
          %251 = sbr.rel (%p249) target = $region24
        $region23: #{tpu_custom_call.1} parent=11 // pred_region
          _
        $region24: #{tpu_custom_call.1} parent=11 // pred_fallthru
          _
        // Predicated region
        $region25: #{tpu_custom_call.1} parent=11 // pred_check
          %p252 = pneg %p134
        $region26: #{tpu_custom_call.1} parent=11 // pred_check_branch
          %254 = sbr.rel (%p252) target = $region28
        $region27: #{tpu_custom_call.1} parent=11 // pred_region
          _
        $region28: #{tpu_custom_call.1} parent=11 // pred_fallthru
          _
        // Predicated region
        $region29: #{tpu_custom_call.1} parent=11 // pred_check
          %p255 = pneg %p155
        $region30: #{tpu_custom_call.1} parent=11 // pred_check_branch
          %257 = sbr.rel (%p255) target = $region32
        $region31: #{tpu_custom_call.1} parent=11 // pred_region
          _
        $region32: #{tpu_custom_call.1} parent=11 // pred_fallthru
          _
        // Predicated region
        $region33: #{tpu_custom_call.1} parent=11 // pred_check
          %p258 = pneg %p176
        $region34: #{tpu_custom_call.1} parent=11 // pred_check_branch
          %260 = sbr.rel (%p258) target = $region36
        $region35: #{tpu_custom_call.1} parent=11 // pred_region
          _
        $region36: #{tpu_custom_call.1} parent=11 // pred_fallthru
          _
      $region12: #{tpu_custom_call.1} parent=5 // pred_fallthru
        _
      %p261 = scmp.lt.s32.totalorder %s24, 4
      // Predicated region
      $region37: #{tpu_custom_call.1} parent=5 // pred_check
        %p262 = pneg %p261
      $region38: #{tpu_custom_call.1} parent=5 // pred_check_branch
        %264 = sbr.rel (%p262) target = $region40
      $region39: #{tpu_custom_call.1} parent=5 // pred_region
        // Predicated region
        $region41: #{tpu_custom_call.1} parent=39 // pred_check
          %p265 = pneg %p44
        $region42: #{tpu_custom_call.1} parent=39 // pred_check_branch
          %267 = sbr.rel (%p265) target = $region44
        $region43: #{tpu_custom_call.1} parent=39 // pred_region
          %s268 = sand.u32 %s34, 1
          %s269 = scalar_lea.sflag [#allocation3], %s268
          %s270 = sand.u32 %s34, 1
          %s271 = smul.addr %s270, 16
          %s272 = scalar_lea.vmem [#allocation2], %s271
          %s273 = smul.u32 2, %s24
          %s275 = ssub.s32 256, 256
          %276 = vsyncadd %s269, %s275
          %s277 = smul.addr %s273, 128
          %s278 = scalar_lea.hbm %s0, %s277
          %s279 = sshll.u32 %s272, 4
          %s280 = int_to_ptr.vmem [resolvable:$true] %s279
          %285 = dma.hbm_to_vmem [thread:$0]  %s278, 256, %s280, %s269, 128, 128, 8
        $region44: #{tpu_custom_call.1} parent=39 // pred_fallthru
          _
      $region40: #{tpu_custom_call.1} parent=5 // pred_fallthru
        _
      %p286 = scmp.le.s32.totalorder 1, %s24
      %p287 = scmp.lt.s32.totalorder %s24, 5
      %p288 = pnand %p286, %p287
      %p289 = pneg %p288
      // Predicated region
      $region45: #{tpu_custom_call.1} parent=5 // pred_check
        _
      $region46: #{tpu_custom_call.1} parent=5 // pred_check_branch
        %291 = sbr.rel (%p288) target = $region48
      $region47: #{tpu_custom_call.1} parent=5 // pred_region
        %s292 = ssub.s32 %s24, 1
        %s293 = sand.u32 %s37, 1
        %s294 = scalar_lea.sflag [#allocation3], %s293
        %s295 = sand.u32 %s37, 1
        %s296 = smul.addr %s295, 16
        %s297 = scalar_lea.vmem [#allocation2], %s296
        // Predicated region
        $region49: #{tpu_custom_call.1} parent=47 // pred_check
          %p298 = pneg %p50
        $region50: #{tpu_custom_call.1} parent=47 // pred_check_branch
          %300 = sbr.rel (%p298) target = $region52
        $region51: #{tpu_custom_call.1} parent=47 // pred_region
          %301 = dma.done %s294, 256
        $region52: #{tpu_custom_call.1} parent=47 // pred_fallthru
          _
        %s302 = sand.u32 %s37, 1
        %s303 = scalar_lea.sflag [#allocation3], %s302
        %s304 = sand.u32 %s37, 1
        %s305 = smul.addr %s304, 16
        %s306 = scalar_lea.vmem [#allocation2], %s305
        %p307 = pneg %p50
        %p308 = pneg %p47
        %p309 = pneg %p71
        %p310 = pneg %p68
        %p311 = pneg %p92
        %p312 = pneg %p89
        %p313 = pneg %p113
        %p314 = pneg %p110
        %p315 = pneg %p134
        %p316 = pneg %p131
        %p317 = pneg %p155
        %p318 = pneg %p152
        %p319 = pneg %p176
        %p320 = pneg %p173
        %p321 = pneg %p202
        %p322 = pneg %p199
        %s323 = sand.u32 %s189, 1
        %s324 = scalar_lea.sflag [#allocation4], %s323
        %s325 = sand.u32 %s189, 1
        %s326 = smul.addr %s325, 16
        %s327 = scalar_lea.vmem [#allocation5], %s326
        %p328 = pneg %p228
        %p329 = pneg %p225
        %s330 = sand.u32 %s215, 1
        %s331 = scalar_lea.sflag [#allocation7], %s330
        %s332 = sand.u32 %s215, 1
        %s333 = smul.addr %s332, 16
        %s334 = scalar_lea.vmem [#allocation6], %s333
        %s335 = smul.u32 2, %s29
        %s336 = smul.u32 2, %s29
        %s337 = smul.u32 2, %s29
        %v339 = vld [vmem:[%s297] sm:$0xff]
        %v340 = vld [vmem:[%s297 + $0x8] sm:$0xff]
        %v341 = vpack.c.bf16 %v340, %v339
        %v342 = vld [vmem:[%s1] sm:$0xf]
        %v343 = vld [vmem:[%s1 + $0x4] sm:$0xf]
        %v344 = vld [vmem:[%s1 + $0x8] sm:$0xf]
        %v345 = vld [vmem:[%s1 + $0xc] sm:$0xf]
        %v346 = vld [vmem:[%s1 + $0x10] sm:$0xf]
        %v347 = vld [vmem:[%s1 + $0x14] sm:$0xf]
        %v348 = vld [vmem:[%s1 + $0x18] sm:$0xf]
        %v349 = vld [vmem:[%s1 + $0x1c] sm:$0xf]
        %v350 = vld [vmem:[%s2] sm:$0x1]
        %v352 = vlaneseq
        %v353 = vshrl.u32 %v352, 7
        %v354 = vsub.s32 0, %v353
        %v355 = vrot.slane %v350, %v354
        %v365 = vunpack.c.l.b16 %v342
        %v366 = vunpack.c.l.b16 %v343
        %v367 = vunpack.c.l.b16 %v344
        %v368 = vunpack.c.l.b16 %v345
        %v369 = vunpack.c.l.b16 %v346
        %v370 = vunpack.c.l.b16 %v347
        %v371 = vunpack.c.l.b16 %v348
        %v372 = vunpack.c.l.b16 %v349
        %v373 = vpack.c.b16 %v366, %v365
        %v374 = vpack.c.b16 %v368, %v367
        %v375 = vpack.c.b16 %v370, %v369
        %v376 = vpack.c.b16 %v372, %v371
        %vm381 = vcmask 523264
        %v383 = vsel %vm381, %v341, 0
        %385 = vmatprep.subr.bf16.mxu0 0
        %386 = vmatpush1.bf16.msra.mxu0 %v373
        %387 = vmatprep.subr.bf16.mxu0 0
        %388 = vmatpush1.bf16.msra.mxu0 %v374
        %389 = vmatprep.subr.bf16.mxu0 0
        %390 = vmatpush1.bf16.msra.mxu0 %v375
        %391 = vmatprep.subr.bf16.mxu0 0
        %392 = vmatpush1.bf16.msra.mxu0 %v376
        %393 = vmatprep.subr.bf16.mxu0 0
        %394 = vmatpush1.bf16.msra.mxu0 0
        %395 = vmatprep.subr.bf16.mxu0 0
        %396 = vmatpush1.bf16.msra.mxu0 0
        %397 = vmatprep.subr.bf16.mxu0 0
        %398 = vmatpush1.bf16.msra.mxu0 0
        %399 = vmatprep.subr.bf16.mxu0 0
        %400 = vmatpush1.bf16.msra.mxu0 0
        %401 = vmatprep.subr.bf16.mxu0 0
        %402 = vmatpush1.bf16.msra.mxu0 0
        %403 = vmatprep.subr.bf16.mxu0 0
        %404 = vmatpush1.bf16.msra.mxu0 0
        %405 = vmatprep.subr.bf16.mxu0 0
        %406 = vmatpush1.bf16.msra.mxu0 0
        %407 = vmatprep.subr.bf16.mxu0 0
        %408 = vmatpush1.bf16.msra.mxu0 0
        %409 = vmatprep.subr.bf16.mxu0 0
        %410 = vmatpush1.bf16.msra.mxu0 0
        %411 = vmatprep.subr.bf16.mxu0 0
        %412 = vmatpush1.bf16.msra.mxu0 0
        %413 = vmatprep.subr.bf16.mxu0 0
        %414 = vmatpush1.bf16.msra.mxu0 0
        %415 = vmatprep.subr.bf16.mxu0 0
        %416 = vmatpush1.bf16.msra.mxu0 0
        %417 = vmatprep.mubr.bf16.mxu0 0
        %418 = vmatmul.mubr.bf16.gmra.mrb[0].mxu0 %v383
        %v419 = vpop.f32.mrb[0].mxu0
        %v420 = vadd.f32 %v355, %v419
        %v421 = vpop.f32.mrb[0].mxu0
        %v422 = vpop.f32.mrb[0].mxu0
        %v423 = vadd.f32 %v355, %v422
        %v424 = vpop.f32.mrb[0].mxu0
        %425 = vdwg.mxu0
        %v426 = vmax.f32 %v420, 0.0
        %v427 = vmax.f32 %v423, 0.0
        %v428 = vpack.c.bf16 %v427, %v426
        %v429 = vld [vmem:[%s3] sm:$0xf]
        %v430 = vld [vmem:[%s3 + $0x4] sm:$0xf]
        %v431 = vld [vmem:[%s3 + $0x8] sm:$0xf]
        %v432 = vld [vmem:[%s3 + $0xc] sm:$0xf]
        %v433 = vld [vmem:[%s4] sm:$0x1]
        %v435 = vlaneseq
        %v436 = vshrl.u32 %v435, 7
        %v437 = vsub.s32 0, %v436
        %v438 = vrot.slane %v433, %v437
        %v444 = vunpack.c.l.b16 %v429
        %v445 = vunpack.c.l.b16 %v430
        %v446 = vunpack.c.l.b16 %v431
        %v447 = vunpack.c.l.b16 %v432
        %v448 = vpack.c.b16 %v445, %v444
        %v449 = vpack.c.b16 %v447, %v446
        %vm452 = vcmask 261120
        %v454 = vsel %vm452, %v428, 0
        %456 = vmatprep.subr.bf16.mxu0 0
        %457 = vmatpush1.bf16.msra.mxu0 %v448
        %458 = vmatprep.subr.bf16.mxu0 0
        %459 = vmatpush1.bf16.msra.mxu0 %v449
        %460 = vmatprep.subr.bf16.mxu0 0
        %461 = vmatpush1.bf16.msra.mxu0 0
        %462 = vmatprep.subr.bf16.mxu0 0
        %463 = vmatpush1.bf16.msra.mxu0 0
        %464 = vmatprep.subr.bf16.mxu0 0
        %465 = vmatpush1.bf16.msra.mxu0 0
        %466 = vmatprep.subr.bf16.mxu0 0
        %467 = vmatpush1.bf16.msra.mxu0 0
        %468 = vmatprep.subr.bf16.mxu0 0
        %469 = vmatpush1.bf16.msra.mxu0 0
        %470 = vmatprep.subr.bf16.mxu0 0
        %471 = vmatpush1.bf16.msra.mxu0 0
        %472 = vmatprep.subr.bf16.mxu0 0
        %473 = vmatpush1.bf16.msra.mxu0 0
        %474 = vmatprep.subr.bf16.mxu0 0
        %475 = vmatpush1.bf16.msra.mxu0 0
        %476 = vmatprep.subr.bf16.mxu0 0
        %477 = vmatpush1.bf16.msra.mxu0 0
        %478 = vmatprep.subr.bf16.mxu0 0
        %479 = vmatpush1.bf16.msra.mxu0 0
        %480 = vmatprep.subr.bf16.mxu0 0
        %481 = vmatpush1.bf16.msra.mxu0 0
        %482 = vmatprep.subr.bf16.mxu0 0
        %483 = vmatpush1.bf16.msra.mxu0 0
        %484 = vmatprep.subr.bf16.mxu0 0
        %485 = vmatpush1.bf16.msra.mxu0 0
        %486 = vmatprep.subr.bf16.mxu0 0
        %487 = vmatpush1.bf16.msra.mxu0 0
        %488 = vmatprep.mubr.bf16.mxu0 0
        %489 = vmatmul.mubr.bf16.gmra.mrb[0].mxu0 %v454
        %v490 = vpop.f32.mrb[0].mxu0
        %v491 = vadd.f32 %v438, %v490
        %v492 = vpop.f32.mrb[0].mxu0
        %v493 = vpop.f32.mrb[0].mxu0
        %v494 = vadd.f32 %v438, %v493
        %v495 = vpop.f32.mrb[0].mxu0
        %496 = vdwg.mxu0
        %v497 = vmax.f32 %v491, 0.0
        %v498 = vmax.f32 %v494, 0.0
        %v499 = vpack.c.bf16 %v498, %v497
        %v500 = vld [vmem:[%s5] sm:$0xf]
        %v501 = vld [vmem:[%s5 + $0x4] sm:$0xf]
        %v502 = vld [vmem:[%s5 + $0x8] sm:$0xf]
        %v503 = vld [vmem:[%s5 + $0xc] sm:$0xf]
        %v504 = vld [vmem:[%s6] sm:$0x1]
        %v506 = vlaneseq
        %v507 = vshrl.u32 %v506, 7
        %v508 = vsub.s32 0, %v507
        %v509 = vrot.slane %v504, %v508
        %v515 = vunpack.c.l.b16 %v500
        %v516 = vunpack.c.l.b16 %v501
        %v517 = vunpack.c.l.b16 %v502
        %v518 = vunpack.c.l.b16 %v503
        %v519 = vpack.c.b16 %v516, %v515
        %v520 = vpack.c.b16 %v518, %v517
        %v524 = vsel %vm452, %v499, 0
        %526 = vmatprep.subr.bf16.mxu0 0
        %527 = vmatpush1.bf16.msra.mxu0 %v519
        %528 = vmatprep.subr.bf16.mxu0 0
        %529 = vmatpush1.bf16.msra.mxu0 %v520
        %530 = vmatprep.subr.bf16.mxu0 0
        %531 = vmatpush1.bf16.msra.mxu0 0
        %532 = vmatprep.subr.bf16.mxu0 0
        %533 = vmatpush1.bf16.msra.mxu0 0
        %534 = vmatprep.subr.bf16.mxu0 0
        %535 = vmatpush1.bf16.msra.mxu0 0
        %536 = vmatprep.subr.bf16.mxu0 0
        %537 = vmatpush1.bf16.msra.mxu0 0
        %538 = vmatprep.subr.bf16.mxu0 0
        %539 = vmatpush1.bf16.msra.mxu0 0
        %540 = vmatprep.subr.bf16.mxu0 0
        %541 = vmatpush1.bf16.msra.mxu0 0
        %542 = vmatprep.subr.bf16.mxu0 0
        %543 = vmatpush1.bf16.msra.mxu0 0
        %544 = vmatprep.subr.bf16.mxu0 0
        %545 = vmatpush1.bf16.msra.mxu0 0
        %546 = vmatprep.subr.bf16.mxu0 0
        %547 = vmatpush1.bf16.msra.mxu0 0
        %548 = vmatprep.subr.bf16.mxu0 0
        %549 = vmatpush1.bf16.msra.mxu0 0
        %550 = vmatprep.subr.bf16.mxu0 0
        %551 = vmatpush1.bf16.msra.mxu0 0
        %552 = vmatprep.subr.bf16.mxu0 0
        %553 = vmatpush1.bf16.msra.mxu0 0
        %554 = vmatprep.subr.bf16.mxu0 0
        %555 = vmatpush1.bf16.msra.mxu0 0
        %556 = vmatprep.subr.bf16.mxu0 0
        %557 = vmatpush1.bf16.msra.mxu0 0
        %558 = vmatprep.mubr.bf16.mxu0 0
        %559 = vmatmul.mubr.bf16.gmra.mrb[0].mxu0 %v524
        %v560 = vpop.f32.mrb[0].mxu0
        %v561 = vadd.f32 %v509, %v560
        %v562 = vpop.f32.mrb[0].mxu0
        %v563 = vpop.f32.mrb[0].mxu0
        %v564 = vadd.f32 %v509, %v563
        %v565 = vpop.f32.mrb[0].mxu0
        %566 = vdwg.mxu0
        %567 = vmax.xlane.f32.xlu0 %v561
        %v568 = vpop.xlane.xlu0 %567
        %569 = vmax.xlane.f32.xlu0 %v564
        %v570 = vpop.xlane.xlu0 %569
        %v571 = vsub.f32 %v561, %v568
        %v572 = vsub.f32 %v564, %v570
        %v573 = vmul.f32 %v571, 1.442695
        %v574 = vpow.pop %v573
        %v575 = vmul.f32 %v572, 1.442695
        %v576 = vpow.pop %v575
        %577 = vadd.xlane.f32.xlu0 %v574
        %v578 = vpop.xlane.xlu0 %577
        %579 = vadd.xlane.f32.xlu0 %v576
        %v580 = vpop.xlane.xlu0 %579
        %v581 = vrcp.pop %v578
        %v582 = vrcp.pop %v580
        %v583 = vmul.f32 %v574, %v581
        %v584 = vmul.f32 %v576, %v582
        %585 = vst [vmem:[%s327] sm:$0xff] %v583
        %586 = vst [vmem:[%s327 + $0x8] sm:$0xff] %v584
        %v587 = vlog2.pop %v578
        %v588 = vmul.f32 %v587, 0.6931472
        %v589 = vlog2.pop %v580
        %v590 = vmul.f32 %v589, 0.6931472
        %v591 = vsub.f32 %v571, %v588
        %v592 = vsub.f32 %v572, %v590
        %593 = vst [vmem:[%s334] sm:$0xff] %v591
        %594 = vst [vmem:[%s334 + $0x8] sm:$0xff] %v592
        %s595 = sand.u32 %s189, 1
        %s596 = scalar_lea.sflag [#allocation4], %s595
        %s597 = sand.u32 %s189, 1
        %s598 = smul.addr %s597, 16
        %s599 = scalar_lea.vmem [#allocation5], %s598
        %s600 = sand.u32 %s215, 1
        %s601 = scalar_lea.sflag [#allocation7], %s600
        %s602 = sand.u32 %s215, 1
        %s603 = smul.addr %s602, 16
        %s604 = scalar_lea.vmem [#allocation6], %s603
        // Predicated region
        $region53: #{tpu_custom_call.1} parent=47 // pred_check
          %p605 = pneg %p199
        $region54: #{tpu_custom_call.1} parent=47 // pred_check_branch
          %607 = sbr.rel (%p605) target = $region56
        $region55: #{tpu_custom_call.1} parent=47 // pred_region
          %s608 = smul.u32 2, %s29
          %s610 = ssub.s32 256, 256
          %611 = vsyncadd %s596, %s610
          %s612 = smul.addr %s608, 128
          %s613 = scalar_lea.hbm %s7, %s612
          %s614 = sshll.u32 %s599, 4
          %s615 = int_to_ptr.vmem [resolvable:$true] %s614
          %620 = dma.vmem_to_hbm [thread:$0]  %s615, 256, %s613, %s596, 128, 128, 8
        $region56: #{tpu_custom_call.1} parent=47 // pred_fallthru
          _
        // Predicated region
        $region57: #{tpu_custom_call.1} parent=47 // pred_check
          %p621 = pneg %p225
        $region58: #{tpu_custom_call.1} parent=47 // pred_check_branch
          %623 = sbr.rel (%p621) target = $region60
        $region59: #{tpu_custom_call.1} parent=47 // pred_region
          %s624 = smul.u32 2, %s29
          %s626 = ssub.s32 256, 256
          %627 = vsyncadd %s601, %s626
          %s628 = smul.addr %s624, 128
          %s629 = scalar_lea.hbm %s8, %s628
          %s630 = sshll.u32 %s604, 4
          %s631 = int_to_ptr.vmem [resolvable:$true] %s630
          %636 = dma.vmem_to_hbm [thread:$0]  %s631, 256, %s629, %s601, 128, 128, 8
        $region60: #{tpu_custom_call.1} parent=47 // pred_fallthru
          _
      $region48: #{tpu_custom_call.1} parent=5 // pred_fallthru
        _
      %p637 = scmp.le.s32.totalorder 2, %s24
      // Predicated region
      $region61: #{tpu_custom_call.1} parent=5 // pred_check
        %p638 = pneg %p637
      $region62: #{tpu_custom_call.1} parent=5 // pred_check_branch
        %640 = sbr.rel (%p638) target = $region64
      $region63: #{tpu_custom_call.1} parent=5 // pred_region
        %s641 = ssub.s32 %s24, 2
        // Predicated region
        $region65: #{tpu_custom_call.1} parent=63 // pred_check
          %p642 = pneg %p205
        $region66: #{tpu_custom_call.1} parent=63 // pred_check_branch
          %644 = sbr.rel (%p642) target = $region68
        $region67: #{tpu_custom_call.1} parent=63 // pred_region
          %s645 = sand.u32 %s190, 1
          %s646 = scalar_lea.sflag [#allocation4], %s645
          %s647 = sand.u32 %s190, 1
          %s648 = smul.addr %s647, 16
          %s649 = scalar_lea.vmem [#allocation5], %s648
          %650 = dma.done %s646, 256
        $region68: #{tpu_custom_call.1} parent=63 // pred_fallthru
          _
        // Predicated region
        $region69: #{tpu_custom_call.1} parent=63 // pred_check
          %p651 = pneg %p231
        $region70: #{tpu_custom_call.1} parent=63 // pred_check_branch
          %653 = sbr.rel (%p651) target = $region72
        $region71: #{tpu_custom_call.1} parent=63 // pred_region
          %s654 = sand.u32 %s216, 1
          %s655 = scalar_lea.sflag [#allocation7], %s654
          %s656 = sand.u32 %s216, 1
          %s657 = smul.addr %s656, 16
          %s658 = scalar_lea.vmem [#allocation6], %s657
          %659 = dma.done %s655, 256
        $region72: #{tpu_custom_call.1} parent=63 // pred_fallthru
          _
      $region64: #{tpu_custom_call.1} parent=5 // pred_fallthru
        _
    $region6: #{tpu_custom_call.1} parent=1 // loop_footer
      %s28 = sadd.s32 1, %s24
    $region7: #{tpu_custom_call.1} parent=1 // loop_footer_branch
      %23 = sbr.rel target = $region3
    $region8: #{tpu_custom_call.1} parent=1 // loop_exit
      _
    %660 = vsyncpa [#allocation3], 1
    %s661 = scalar_lea.sflag [#allocation3], 1
    %662 = vsyncpa %s661, 1
    %663 = vsyncpa [#allocation4], 1
    %s664 = scalar_lea.sflag [#allocation4], 1
    %665 = vsyncpa %s664, 1
    %666 = vsyncpa [#allocation7], 1
    %s667 = scalar_lea.sflag [#allocation7], 1
    %668 = vsyncpa %s667, 1

</llo_original>
